<compile_context>
chip_gen: v5e
topology: v5e:2x2
jax: 0.10.0
libtpu: 0.0.40
codegen_flags: <defaults>
</compile_context>

<pallas_src>
import functools
import math

import jax
import jax.numpy as jnp
from jax.experimental import pallas as pl
from jax.experimental.pallas import tpu as pltpu


# ----------------------------- kernels ------------------------------------ #

def _pe_eval_kernel(x_ref, pe_ref, o_ref):
    # x_ref, pe_ref, o_ref : (TS, B*D)
    o_ref[...] = (x_ref[...] + pe_ref[...]).astype(o_ref.dtype)


def _pe_dropout_kernel(x_ref, pe_ref, bits_ref, o_ref, *, threshold, scale):
    # inverted dropout: keep iff bits >= threshold, scale kept values by 1/(1-p)
    y = x_ref[...] + pe_ref[...]
    keep = bits_ref[...] >= jnp.uint32(threshold)
    y = jnp.where(keep, y * jnp.asarray(scale, y.dtype), jnp.zeros_like(y))
    o_ref[...] = y.astype(o_ref.dtype)


# ----------------------------- helpers ------------------------------------ #

def make_sinusoidal_pe(max_len, d_model, dtype=jnp.float32):
    """Mirror of the PyTorch buffer construction; returns (max_len, d_model)."""
    position = jnp.arange(max_len, dtype=jnp.float32)[:, None]            # (L, 1)
    div_term = jnp.exp(
        jnp.arange(0, d_model, 2, dtype=jnp.float32)
        * (-math.log(10000.0) / d_model)
    )                                                                      # (D/2,)
    ang = position * div_term                                              # (L, D/2)
    # pe[:, 0::2] = sin, pe[:, 1::2] = cos  -> interleave
    pe = jnp.stack([jnp.sin(ang), jnp.cos(ang)], axis=-1).reshape(max_len, d_model)
    return pe.astype(dtype)


def _pick_tile_rows(seq_len, row_bytes, target_bytes=1 << 20):
    """Tile rows: ~target_bytes per x block, multiple of 8, capped at padded S."""
    ts = max(8, (target_bytes // max(1, row_bytes)) // 8 * 8)
    ts = min(ts, pl.cdiv(seq_len, 8) * 8)
    return int(ts)


# ----------------------------- wrapper ------------------------------------ #

def positional_encoding(x, pe_table, *, dropout_p=0.1, training=False, rng_key=None):
    """x: (S, B, D); pe_table: (max_len, D).  Returns (S, B, D)."""
    S, B, D = x.shape
    dtype = x.dtype
    BD = B * D
    itemsize = jnp.dtype(dtype).itemsize

    # Lane-dense 2-D layout; pe cast to x.dtype and tiled across batch.
    x2 = x.reshape(S, BD)
    pe2 = jnp.tile(pe_table[:S].astype(dtype), (1, B))                     # (S, BD)

    apply_dropout = bool(training) and float(dropout_p) > 0.0

    # Tile over S, pad to a multiple of the tile (tail handling).
    ts = _pick_tile_rows(S, BD * itemsize)
    s_pad = pl.cdiv(S, ts) * ts
    if s_pad != S:
        pad = ((0, s_pad - S), (0, 0))
        x2 = jnp.pad(x2, pad)
        pe2 = jnp.pad(pe2, pad)
    grid = (s_pad // ts,)

    blk = pl.BlockSpec((ts, BD), lambda i: (i, 0))

    in_specs = [blk, blk]
    args = [x2, pe2]
    bytes_accessed = 3 * s_pad * BD * itemsize        # read x, read pe, write out

    if apply_dropout:
        if rng_key is None:
            rng_key = jax.random.PRNGKey(0)
        bits = jax.random.bits(rng_key, (S, BD), dtype=jnp.uint32)
        if s_pad != S:
            bits = jnp.pad(bits, ((0, s_pad - S), (0, 0)),
                           constant_values=jnp.uint32(0xFFFFFFFF))
        threshold = min(int(round(float(dropout_p) * 4294967296.0)), 4294967295)
        scale = 1.0 / (1.0 - float(dropout_p))
        kernel = functools.partial(_pe_dropout_kernel,
                                   threshold=threshold, scale=scale)
        in_specs = in_specs + [blk]
        args = args + [bits]
        bytes_accessed += s_pad * BD * 4              # read bits
    else:
        kernel = _pe_eval_kernel

    out2 = pl.pallas_call(
        kernel,
        grid=grid,
        in_specs=in_specs,
        out_specs=pl.BlockSpec((ts, BD), lambda i: (i, 0)),
        out_shape=jax.ShapeDtypeStruct((s_pad, BD), dtype),
        compiler_params=pltpu.CompilerParams(
            dimension_semantics=("parallel",),
        ),
        cost_estimate=pl.CostEstimate(
            flops=int(s_pad * BD),
            transcendentals=0,
            bytes_accessed=int(bytes_accessed),
        ),
    )(*args)

    return out2[:S].reshape(S, B, D)


# ------------------------------- demo -------------------------------------- #

if __name__ == "__main__":
    # Small shapes consistent with the module: (seq=8, batch=2, d_model=32)
    S, B, D = 8, 2, 32
    MAX_LEN = 64
    P = 0.1

    key = jax.random.PRNGKey(0)
    x = jax.random.normal(key, (S, B, D), dtype=jnp.float32)
    pe_table = make_sinusoidal_pe(MAX_LEN, D)

    # Eval-mode forward (dropout is identity) -- exact match to PyTorch .eval()
    out = positional_encoding(x, pe_table, dropout_p=P, training=False)
    out = jax.block_until_ready(out)

    ref = x + pe_table[:S][:, None, :]
    assert out.shape == (S, B, D)
    assert jnp.allclose(out, ref, atol=1e-6, rtol=1e-6), "eval mismatch vs reference"

    # Training-mode forward (dropout active); verify against a pure-JAX
    # reference that reproduces the same mask from the same key.
    drop_key = jax.random.PRNGKey(1234)
    out_tr = positional_encoding(x, pe_table, dropout_p=P, training=True,
                                 rng_key=drop_key)
    out_tr = jax.block_until_ready(out_tr)

    bits_ref = jax.random.bits(drop_key, (S, B * D), dtype=jnp.uint32).reshape(S, B, D)
    thr = min(int(round(P * 4294967296.0)), 4294967295)
    keep_ref = bits_ref >= jnp.uint32(thr)
    ref_tr = jnp.where(keep_ref, ref / jnp.float32(1.0 - P), 0.0)
    assert out_tr.shape == (S, B, D)
    assert jnp.allclose(out_tr, ref_tr, atol=1e-5, rtol=1e-5), "train mismatch vs reference"

    print("KERNEL_OK")
</pallas_src>

<mosaic_0001>
module attributes {stable_mosaic.version = 11 : i64} {
  func.func @_pe_eval_kernel(%arg0: i32, %arg1: memref<8x64xf32, #tpu.memory_space<vmem>>, %arg2: memref<8x64xf32, #tpu.memory_space<vmem>>, %arg3: memref<8x64xf32, #tpu.memory_space<vmem>>) attributes {dimension_semantics = [#tpu.dimension_semantics<parallel>], iteration_bounds = array<i64: 1>, scalar_prefetch = 0 : i64, scratch_operands = 0 : i64, tpu.core_type = #tpu.core_type<tc>, window_params = [{transform_indices = @transform_0, window_bounds = array<i64: 8, 64>}, {transform_indices = @transform_1, window_bounds = array<i64: 8, 64>}, {transform_indices = @transform_2, window_bounds = array<i64: 8, 64>}]} {
    %c0 = arith.constant 0 : index
    %c0_0 = arith.constant 0 : index
    %0 = vector.load %arg1[%c0, %c0_0] : memref<8x64xf32, #tpu.memory_space<vmem>>, vector<8x64xf32>
    %c0_1 = arith.constant 0 : index
    %c0_2 = arith.constant 0 : index
    %1 = vector.load %arg2[%c0_1, %c0_2] : memref<8x64xf32, #tpu.memory_space<vmem>>, vector<8x64xf32>
    %2 = arith.addf %0, %1 : vector<8x64xf32>
    %c0_3 = arith.constant 0 : index
    %c0_4 = arith.constant 0 : index
    %3 = vector.load %arg3[%c0_3, %c0_4] : memref<8x64xf32, #tpu.memory_space<vmem>>, vector<8x64xf32>
    tpu.vector_store %arg3[%c0_3, %c0_4], %2 {strides = array<i32>} : memref<8x64xf32, #tpu.memory_space<vmem>>, vector<8x64xf32>,
    return
  }
  func.func @transform_0(%arg0: i32) -> (i32, i32) {
    %c0_i32 = arith.constant 0 : i32
    %c0_i32_0 = arith.constant 0 : i32
    return %arg0, %c0_i32 : i32, i32
  }
  func.func @transform_1(%arg0: i32) -> (i32, i32) {
    %c0_i32 = arith.constant 0 : i32
    %c0_i32_0 = arith.constant 0 : i32
    return %arg0, %c0_i32 : i32, i32
  }
  func.func @transform_2(%arg0: i32) -> (i32, i32) {
    %c0_i32 = arith.constant 0 : i32
    %c0_i32_0 = arith.constant 0 : i32
    return %arg0, %c0_i32 : i32, i32
  }
}

</mosaic_0001>

<llo_original>
// kernel: tpu_custom_call.1
$region0: #{tpu_custom_call.1}
  #allocation0 [shape = 'u32[]', space=smem, size = 0x4, offset = 0x4, fixed_abs, tag = 'smem constant byte address 0x4 - core index']
  #allocation1 [shape = 'u32[72,128]{1,0:T(1,128)}', space=vmem, size = 0x9000, scoped, tag = 'internal scratch']
  %s0 = inlined_call_operand.hbm [shape: f32[8,64], index: 0, kind: input, shape index: {}]
  %s1 = inlined_call_operand.hbm [shape: f32[8,64], index: 1, kind: input, shape index: {}]
  %s2 = inlined_call_operand.hbm [shape: f32[8,64], index: 2, kind: output, shape index: {}]
  %s3 = sld [smem:[#allocation0]]
  $region26: #{tpu_custom_call.1} parent=0
    _
  %s5 = ssub.s32 1, %s3
  %s6 = scalar_select 0, %s5, %s3
  $region1: #{tpu_custom_call.1} parent=0
    #allocation2 [shape = 'u8[4096]{0}', space=vmem, size = 0x1000, scoped, tag = 'input window, operand 0, single buffered']
    #allocation3 [shape = 's32[1]{0}', space=sflag, size = 0x4, scoped, tag = 'scoped memory for tpu_custom_call.1']
    #allocation4 [shape = 's32[1]{0}', space=sflag, size = 0x4, scoped, tag = 'scoped memory for tpu_custom_call.1']
    #allocation5 [shape = 'u8[4096]{0}', space=vmem, size = 0x1000, scoped, tag = 'input window, operand 1, single buffered']
    #allocation6 [shape = 's32[1]{0}', space=sflag, size = 0x4, scoped, tag = 'scoped memory for tpu_custom_call.1']
    #allocation7 [shape = 'u8[4096]{0}', space=vmem, size = 0x1000, scoped, tag = 'output window, operand 0, single buffered']
    %7 = vsyncpa [#allocation3], 0
    %8 = vsyncpa [#allocation6], 0
    %9 = vsyncpa [#allocation4], 0
    // Predicated region
    $region2: #{tpu_custom_call.1} parent=1 // pred_check
      _
    $region3: #{tpu_custom_call.1} parent=1 // pred_check_branch
      %11 = sbr.rel (0) target = $region5
    $region4: #{tpu_custom_call.1} parent=1 // pred_region
      %13 = vsyncadd [#allocation3], 0
      %s15 = sshll.u32 %s0, 4
      %s16 = int_to_ptr.hbm [resolvable:$true] %s15
      %s17 = sshll.u32 [#allocation2], 4
      %s18 = int_to_ptr.vmem [resolvable:$true] %s17
      %20 = dma.hbm_to_vmem [thread:$0]  %s16, 128, %s18, [#allocation3]
    $region5: #{tpu_custom_call.1} parent=1 // pred_fallthru
      _
    // Predicated region
    $region6: #{tpu_custom_call.1} parent=1 // pred_check
      _
    $region7: #{tpu_custom_call.1} parent=1 // pred_check_branch
      %22 = sbr.rel (0) target = $region9
    $region8: #{tpu_custom_call.1} parent=1 // pred_region
      %24 = vsyncadd [#allocation6], 0
      %s26 = sshll.u32 %s1, 4
      %s27 = int_to_ptr.hbm [resolvable:$true] %s26
      %s28 = sshll.u32 [#allocation5], 4
      %s29 = int_to_ptr.vmem [resolvable:$true] %s28
      %31 = dma.hbm_to_vmem [thread:$0]  %s27, 128, %s29, [#allocation6]
    $region9: #{tpu_custom_call.1} parent=1 // pred_fallthru
      _
    // Predicated region
    $region10: #{tpu_custom_call.1} parent=1 // pred_check
      _
    $region11: #{tpu_custom_call.1} parent=1 // pred_check_branch
      %33 = sbr.rel (0) target = $region13
    $region12: #{tpu_custom_call.1} parent=1 // pred_region
      %35 = dma.done [#allocation3], 128
    $region13: #{tpu_custom_call.1} parent=1 // pred_fallthru
      _
    // Predicated region
    $region14: #{tpu_custom_call.1} parent=1 // pred_check
      _
    $region15: #{tpu_custom_call.1} parent=1 // pred_check_branch
      %37 = sbr.rel (0) target = $region17
    $region16: #{tpu_custom_call.1} parent=1 // pred_region
      %39 = dma.done [#allocation6], 128
    $region17: #{tpu_custom_call.1} parent=1 // pred_fallthru
      _
    %v40 = vld [vmem:[#allocation2] sm:$0xff]
    %v41 = vld [vmem:[#allocation5] sm:$0xff]
    %v42 = vadd.f32 %v40, %v41
    %vm43 = vcmask 523264
    %44 = vst.msk [vmem:[#allocation7] sm:$0xff] %vm43, %v42
    // Predicated region
    $region18: #{tpu_custom_call.1} parent=1 // pred_check
      _
    $region19: #{tpu_custom_call.1} parent=1 // pred_check_branch
      %46 = sbr.rel (0) target = $region21
    $region20: #{tpu_custom_call.1} parent=1 // pred_region
      %48 = vsyncadd [#allocation4], 0
      %s50 = sshll.u32 [#allocation7], 4
      %s51 = int_to_ptr.vmem [resolvable:$true] %s50
      %s52 = sshll.u32 %s2, 4
      %s53 = int_to_ptr.hbm [resolvable:$true] %s52
      %55 = dma.vmem_to_hbm [thread:$0]  %s51, 128, %s53, [#allocation4]
    $region21: #{tpu_custom_call.1} parent=1 // pred_fallthru
      _
    // Predicated region
    $region22: #{tpu_custom_call.1} parent=1 // pred_check
      _
    $region23: #{tpu_custom_call.1} parent=1 // pred_check_branch
      %57 = sbr.rel (0) target = $region25
    $region24: #{tpu_custom_call.1} parent=1 // pred_region
      %59 = dma.done [#allocation4], 128
    $region25: #{tpu_custom_call.1} parent=1 // pred_fallthru
      _
    %60 = vsyncpa [#allocation3], 1
    %61 = vsyncpa [#allocation6], 1
    %62 = vsyncpa [#allocation4], 1

</llo_original>
